<compile_context>
chip_gen: v6e
topology: v6e:2x2x1
jax: 0.10.0
libtpu: 0.0.40
codegen_flags: <defaults>
</compile_context>

<pallas_src>
import functools

import jax
import jax.numpy as jnp
from jax.experimental import pallas as pl
from jax.experimental.pallas import tpu as pltpu


def _scale_norm_kernel(g_ref, x_ref, o_ref, *, scale, eps):
    # x_ref / o_ref: (row_tile, dim) VMEM tiles; g_ref: (1,) scalar in SMEM.
    x = x_ref[...]
    xf = x.astype(jnp.float32)
    # Sum of squares over the last (lane) axis — f32 accumulation, XLU reduce.
    sq_sum = jnp.sum(xf * xf, axis=-1, keepdims=True)              # (row_tile, 1)
    norm = jnp.sqrt(sq_sum) * scale                                # exact sqrt (compute is free here)
    # Fold g into one per-row multiplier; cast to the input dtype so the
    # writeback multiply does not need a full f32 copy of the tile.
    mult = (g_ref[0] / jnp.maximum(norm, eps)).astype(x.dtype)     # (row_tile, 1)
    o_ref[...] = x * mult


def _round_up(n: int, m: int) -> int:
    return (n + m - 1) // m * m


def scale_norm(x: jax.Array, g: jax.Array, *, eps: float = 1e-5,
               row_tile: int | None = None) -> jax.Array:
    """Apply ScaleNorm over the last dim of `x`. `g` is a scalar (shape (1,))."""
    orig_shape = x.shape
    dim = orig_shape[-1]

    # Flatten all leading dims into rows.
    rows = 1
    for s in orig_shape[:-1]:
        rows *= s
    x2 = x.reshape(rows, dim)

    itemsize = jnp.dtype(x.dtype).itemsize
    # Sublane granularity: 8 rows for 32-bit, 16 for bf16, 32 for int8.
    sublane = max(8, 32 // max(1, itemsize))
    rows_rounded = _round_up(rows, sublane)

    # Generation-aware sizing: v7x has ~2.3x HBM bandwidth per TC but only
    # 64 MiB VMEM, so use bigger blocks there (amortize ~0.35 us per-step
    # pipeline overhead) while keeping double-buffered in+out plus a worst-case
    # f32 reduce temp inside a VMEM budget.
    try:
        vmem_cap = int(pltpu.get_tpu_info().vmem_capacity_bytes)
    except Exception:  # not resolvable at trace time: assume v5e/v6e (128 MiB)
        vmem_cap = 128 * 1024 * 1024
    small_vmem = vmem_cap <= 64 * 1024 * 1024            # v7x-class
    target_bytes = (6 if small_vmem else 4) * 1024 * 1024
    block_budget = (40 if small_vmem else 80) * 1024 * 1024

    if row_tile is None:
        # Resident bytes per row: double-buffered input + output (4x) plus a
        # worst-case f32 temp for the sum-of-squares cast.
        bytes_per_row = 4 * dim * itemsize + 4 * dim
        budget_rows = max(sublane, block_budget // max(1, bytes_per_row))
        row_tile = min(target_bytes // max(1, dim * itemsize), budget_rows)
    row_tile = max(sublane, (int(row_tile) // sublane) * sublane)
    row_tile = min(row_tile, rows_rounded)

    # v7x has 2 TensorCores; with ("parallel",) semantics make sure the grid
    # has at least 2 steps when there is enough work so both cores get rows.
    if rows_rounded >= 2 * sublane and pl.cdiv(rows, row_tile) < 2:
        row_tile = _round_up(rows_rounded // 2, sublane)
    # Tiny inputs: a block may not exceed the array; a full-array-dim block is
    # exempt from the sublane-divisibility rule.
    if row_tile > rows:
        row_tile = rows

    grid = (pl.cdiv(rows, row_tile),)

    # VMEM limit derived from the actual footprint (v5e scoped default is only
    # 16 MiB, so always request at least 32 MiB; cap below physical VMEM).
    block_bytes = row_tile * dim * itemsize
    footprint = 4 * block_bytes + row_tile * dim * 4
    vmem_cap_limit = (48 if small_vmem else 100) * 1024 * 1024
    vmem_limit = int(min(vmem_cap_limit,
                         max(32 * 1024 * 1024, footprint + 8 * 1024 * 1024)))

    g2 = jnp.asarray(g, jnp.float32).reshape(1)

    kernel = functools.partial(
        _scale_norm_kernel,
        scale=float(dim) ** -0.5,
        eps=float(eps),
    )

    out = pl.pallas_call(
        kernel,
        out_shape=jax.ShapeDtypeStruct((rows, dim), x.dtype),
        grid_spec=pltpu.PrefetchScalarGridSpec(
            num_scalar_prefetch=0,
            grid=grid,
            in_specs=[
                # g: scalar parameter, lives in SMEM (no VMEM DMA per step).
                pl.BlockSpec(memory_space=pltpu.MemorySpace.SMEM),
                # x: row-tiled; last block dim is the true full `dim`.
                pl.BlockSpec((row_tile, dim), lambda i: (i, 0)),
            ],
            out_specs=pl.BlockSpec((row_tile, dim), lambda i: (i, 0)),
        ),
        compiler_params=pltpu.CompilerParams(
            dimension_semantics=("parallel",),
            vmem_limit_bytes=vmem_limit,
        ),
    )(g2, x2)

    return out.reshape(orig_shape)


def scale_norm_ref(x, g, eps=1e-5):
    dim = x.shape[-1]
    scale = dim ** (-0.5)
    norm = jnp.linalg.norm(x.astype(jnp.float32), axis=-1, keepdims=True) * scale
    return (x / jnp.maximum(norm, eps) * g[0]).astype(x.dtype)


if __name__ == "__main__":
    key = jax.random.PRNGKey(0)
    # Typical transformer-style input for ScaleNorm: (batch, seq, hidden)
    batch, seq, hidden = 2, 8, 32
    x = jax.random.normal(key, (batch, seq, hidden), dtype=jnp.float32)

    # Parameter init matching nn.Parameter(torch.ones(1)) — deterministic.
    g = jnp.ones((1,), dtype=jnp.float32)

    out = jax.block_until_ready(scale_norm(x, g, eps=1e-5))

    ref = scale_norm_ref(x, g, eps=1e-5)
    assert out.shape == x.shape and out.dtype == x.dtype
    assert jnp.allclose(out, ref, atol=1e-4, rtol=1e-4), \
        f"max abs err = {jnp.max(jnp.abs(out - ref))}"

    print("KERNEL_OK")
</pallas_src>

<mosaic_0001>
module attributes {stable_mosaic.version = 11 : i64} {
  func.func @_scale_norm_kernel(%arg0: i32, %arg1: memref<1xf32, #tpu.memory_space<smem>>, %arg2: memref<8x32xf32, #tpu.memory_space<vmem>>, %arg3: memref<8x32xf32, #tpu.memory_space<vmem>>) attributes {dimension_semantics = [#tpu.dimension_semantics<parallel>], iteration_bounds = array<i64: 2>, scalar_prefetch = 0 : i64, scratch_operands = 0 : i64, tpu.core_type = #tpu.core_type<tc>, window_params = [{transform_indices = @transform_0, window_bounds = array<i64: 1>}, {transform_indices = @transform_1, window_bounds = array<i64: 8, 32>}, {transform_indices = @transform_2, window_bounds = array<i64: 8, 32>}]} {
    %c0 = arith.constant 0 : index
    %c0_0 = arith.constant 0 : index
    %0 = vector.load %arg2[%c0, %c0_0] : memref<8x32xf32, #tpu.memory_space<vmem>>, vector<8x32xf32>
    %1 = arith.mulf %0, %0 : vector<8x32xf32>
    %cst = arith.constant dense<0.000000e+00> : vector<8xf32>
    %2 = vector.multi_reduction <add>, %1, %cst [1] : vector<8x32xf32> to vector<8xf32>
    %3 = vector.shape_cast %2 : vector<8xf32> to vector<8x1xf32>
    %4 = math.sqrt %3 : vector<8x1xf32>
    %cst_1 = arith.constant 0.176776692 : f32
    %5 = vector.broadcast %cst_1 : f32 to vector<8x1xf32>
    %6 = arith.mulf %4, %5 : vector<8x1xf32>
    %c0_2 = arith.constant 0 : index
    %7 = memref.load %arg1[%c0_2] : memref<1xf32, #tpu.memory_space<smem>>
    %cst_3 = arith.constant 9.99999974E-6 : f32
    %8 = vector.broadcast %cst_3 : f32 to vector<8x1xf32>
    %9 = arith.maximumf %6, %8 : vector<8x1xf32>
    %10 = vector.broadcast %7 : f32 to vector<8x1xf32>
    %11 = arith.divf %10, %9 : vector<8x1xf32>
    %12 = vector.broadcast %11 : vector<8x1xf32> to vector<8x32xf32>
    %13 = arith.mulf %0, %12 : vector<8x32xf32>
    %c0_4 = arith.constant 0 : index
    %c0_5 = arith.constant 0 : index
    %14 = vector.load %arg3[%c0_4, %c0_5] : memref<8x32xf32, #tpu.memory_space<vmem>>, vector<8x32xf32>
    tpu.vector_store %arg3[%c0_4, %c0_5], %13 {strides = array<i32>} : memref<8x32xf32, #tpu.memory_space<vmem>>, vector<8x32xf32>,
    return
  }
  func.func @transform_0(%arg0: i32) -> i32 {
    %c0_i32 = arith.constant 0 : i32
    %c0_i32_0 = arith.constant 0 : i32
    return %c0_i32 : i32
  }
  func.func @transform_1(%arg0: i32) -> (i32, i32) {
    %c0_i32 = arith.constant 0 : i32
    %c0_i32_0 = arith.constant 0 : i32
    return %arg0, %c0_i32 : i32, i32
  }
  func.func @transform_2(%arg0: i32) -> (i32, i32) {
    %c0_i32 = arith.constant 0 : i32
    %c0_i32_0 = arith.constant 0 : i32
    return %arg0, %c0_i32 : i32, i32
  }
}

</mosaic_0001>

<llo_original>
// kernel: tpu_custom_call.1
$region0: #{tpu_custom_call.1}
  #allocation0 [shape = 'u32[]', space=smem, size = 0x4, offset = 0x4, fixed_abs, tag = 'smem constant byte address 0x4 - core index']
  #allocation1 [shape = 'u32[144,128]{1,0:T(1,128)}', space=vmem, size = 0x12000, scoped, tag = 'internal scratch']
  #allocation2 [shape = 'f32[1]{0:T(128)S(6)}', space=smem, size = 0x200, scoped, tag = 'scoped memory for tpu_custom_call.1']
  %s0 = inlined_call_operand.<no memory space> [shape: f32[1], index: 0, kind: input, shape index: {}]
  %s1 = inlined_call_operand.hbm [shape: f32[16,32], index: 1, kind: input, shape index: {}]
  %s2 = inlined_call_operand.hbm [shape: f32[16,32], index: 2, kind: output, shape index: {}]
  %s3 = sld [smem:[#allocation0]]
  $region45: #{tpu_custom_call.1} parent=0
    _
  %s5 = ssub.s32 1, %s3
  %s6 = scalar_select 0, %s5, %s3
  %7 = sst [smem:[#allocation2]] %s0
  $region1: #{tpu_custom_call.1} parent=0
    #allocation3 [shape = 'u8[8192]{0}', space=vmem, size = 0x2000, scoped, tag = 'input window, operand 1']
    #allocation4 [shape = 's32[2]{0}', space=sflag, size = 0x8, scoped, tag = 'scoped memory for tpu_custom_call.1']
    #allocation5 [shape = 's32[2]{0}', space=sflag, size = 0x8, scoped, tag = 'scoped memory for tpu_custom_call.1']
    #allocation6 [shape = 'u8[8192]{0}', space=vmem, size = 0x2000, scoped, tag = 'output window, operand 0']
    %8 = vsyncpa [#allocation4], 0
    %s9 = scalar_lea.sflag [#allocation4], 1
    %10 = vsyncpa %s9, 0
    %11 = vsyncpa [#allocation5], 0
    %s12 = scalar_lea.sflag [#allocation5], 1
    %13 = vsyncpa %s12, 0
    loop: start=0, step=1, limit=4
    $region2: #{tpu_custom_call.1} parent=1 // loop_pre_header
      _
    $region3: #{tpu_custom_call.1} parent=1 // loop_header
      %s15 = sphi 0, %s19
      %p16 = scmp.ge.s32.totalorder %s15, 4
      %s23 = sphi 0, %s23
      %s25 = sphi 0, %s23
      %s26 = sphi 0, %s25
      %s40 = sphi 0, %s26
      %s46 = sphi 0, %s48
      %s49 = sphi 0, %s46
      %s50 = sphi 0, %s49
      %s66 = sphi 0, %s50
      %s72 = sphi 0, %s74
      %s75 = sphi 0, %s72
      %s76 = sphi 0, %s75
      %s92 = sphi 0, %s76
    $region4: #{tpu_custom_call.1} parent=1 // loop_header_branch
      %18 = sbr.rel (%p16) target = $region8
    $region5: #{tpu_custom_call.1} parent=1 // loop_body
      %s20 = ssub.s32 %s15, 1
      %s21 = ssub.s32 %s15, 2
      %s22 = sadd.s32 %s15, 1
      %s24 = sadd.s32 %s23, 1
      %p27 = scmp.eq.s32.totalorder %s15, 1
      %p28 = scmp.ne.s32.totalorder %s23, %s25
      %p29 = scmp.eq.s32.totalorder %s15, 0
      %p30 = por %p28, %p29
      %p31 = scmp.ne.s32.totalorder %s23, %s25
      %p32 = scmp.eq.s32.totalorder %s20, 1
      %p33 = por %p31, %p32
      %p34 = scmp.ne.s32.totalorder %s25, %s26
      %p35 = scmp.eq.s32.totalorder %s20, 0
      %p36 = por %p34, %p35
      %p37 = scmp.ne.s32.totalorder %s25, %s26
      %p38 = scmp.eq.s32.totalorder %s21, 1
      %p39 = por %p37, %p38
      %p41 = scmp.ne.s32.totalorder %s26, %s40
      %p42 = scmp.eq.s32.totalorder %s21, 0
      %p43 = por %p41, %p42
      %s44 = ssub.s32 %s15, %s22
      %p45 = scmp.eq.s32.totalorder %s44, 0
      %s47 = sadd.s32 %s46, 1
      %s48 = scalar_select %p45, %s46, %s47
      %p51 = pneg %p45
      %p52 = scmp.eq.s32.totalorder %s15, 1
      %p53 = por %p51, %p52
      %p54 = scmp.ne.s32.totalorder %s46, %s49
      %p55 = scmp.eq.s32.totalorder %s15, 0
      %p56 = por %p54, %p55
      %p57 = scmp.ne.s32.totalorder %s46, %s49
      %p58 = scmp.eq.s32.totalorder %s20, 1
      %p59 = por %p57, %p58
      %p60 = scmp.ne.s32.totalorder %s49, %s50
      %p61 = scmp.eq.s32.totalorder %s20, 0
      %p62 = por %p60, %p61
      %p63 = scmp.ne.s32.totalorder %s49, %s50
      %p64 = scmp.eq.s32.totalorder %s21, 1
      %p65 = por %p63, %p64
      %p67 = scmp.ne.s32.totalorder %s50, %s66
      %p68 = scmp.eq.s32.totalorder %s21, 0
      %p69 = por %p67, %p68
      %s70 = ssub.s32 %s15, %s22
      %p71 = scmp.eq.s32.totalorder %s70, 0
      %s73 = sadd.s32 %s72, 1
      %s74 = scalar_select %p71, %s72, %s73
      %p77 = pneg %p71
      %p78 = scmp.eq.s32.totalorder %s15, 1
      %p79 = por %p77, %p78
      %p80 = scmp.ne.s32.totalorder %s72, %s75
      %p81 = scmp.eq.s32.totalorder %s15, 0
      %p82 = por %p80, %p81
      %p83 = scmp.ne.s32.totalorder %s72, %s75
      %p84 = scmp.eq.s32.totalorder %s20, 1
      %p85 = por %p83, %p84
      %p86 = scmp.ne.s32.totalorder %s75, %s76
      %p87 = scmp.eq.s32.totalorder %s20, 0
      %p88 = por %p86, %p87
      %p89 = scmp.ne.s32.totalorder %s75, %s76
      %p90 = scmp.eq.s32.totalorder %s21, 1
      %p91 = por %p89, %p90
      %p93 = scmp.ne.s32.totalorder %s76, %s92
      %p94 = scmp.eq.s32.totalorder %s21, 0
      %p95 = por %p93, %p94
      %p96 = scmp.le.s32.totalorder 1, %s15
      %p97 = scmp.lt.s32.totalorder %s15, 3
      %p98 = pnand %p96, %p97
      %p99 = pneg %p98
      // Predicated region
      $region9: #{tpu_custom_call.1} parent=5 // pred_check
        _
      $region10: #{tpu_custom_call.1} parent=5 // pred_check_branch
        %101 = sbr.rel (%p98) target = $region12
      $region11: #{tpu_custom_call.1} parent=5 // pred_region
        %s102 = ssub.s32 %s15, 1
        // Predicated region
        $region13: #{tpu_custom_call.1} parent=11 // pred_check
          %p103 = pneg %p36
        $region14: #{tpu_custom_call.1} parent=11 // pred_check_branch
          %105 = sbr.rel (%p103) target = $region16
        $region15: #{tpu_custom_call.1} parent=11 // pred_region
          _
        $region16: #{tpu_custom_call.1} parent=11 // pred_fallthru
          _
      $region12: #{tpu_custom_call.1} parent=5 // pred_fallthru
        _
      %p106 = scmp.lt.s32.totalorder %s15, 2
      // Predicated region
      $region17: #{tpu_custom_call.1} parent=5 // pred_check
        %p107 = pneg %p106
      $region18: #{tpu_custom_call.1} parent=5 // pred_check_branch
        %109 = sbr.rel (%p107) target = $region20
      $region19: #{tpu_custom_call.1} parent=5 // pred_region
        // Predicated region
        $region21: #{tpu_custom_call.1} parent=19 // pred_check
          %p110 = pneg %p56
        $region22: #{tpu_custom_call.1} parent=19 // pred_check_branch
          %112 = sbr.rel (%p110) target = $region24
        $region23: #{tpu_custom_call.1} parent=19 // pred_region
          %s113 = sand.u32 %s46, 1
          %s114 = scalar_lea.sflag [#allocation4], %s113
          %s115 = sand.u32 %s46, 1
          %s116 = smul.addr %s115, 8
          %s117 = scalar_lea.vmem [#allocation3], %s116
          %s119 = ssub.s32 128, 128
          %120 = vsyncadd %s114, %s119
          %s121 = smul.addr %s15, 128
          %s122 = scalar_lea.hbm %s1, %s121
          %s124 = sshll.u32 %s117, 4
          %s125 = int_to_ptr.vmem [resolvable:$true] %s124
          %127 = dma.hbm_to_vmem [thread:$0]  %s122, 128, %s125, %s114
        $region24: #{tpu_custom_call.1} parent=19 // pred_fallthru
          _
      $region20: #{tpu_custom_call.1} parent=5 // pred_fallthru
        _
      %p128 = scmp.le.s32.totalorder 1, %s15
      %p129 = scmp.lt.s32.totalorder %s15, 3
      %p130 = pnand %p128, %p129
      %p131 = pneg %p130
      // Predicated region
      $region25: #{tpu_custom_call.1} parent=5 // pred_check
        _
      $region26: #{tpu_custom_call.1} parent=5 // pred_check_branch
        %133 = sbr.rel (%p130) target = $region28
      $region27: #{tpu_custom_call.1} parent=5 // pred_region
        %s134 = ssub.s32 %s15, 1
        %s135 = sand.u32 %s49, 1
        %s136 = scalar_lea.sflag [#allocation4], %s135
        %s137 = sand.u32 %s49, 1
        %s138 = smul.addr %s137, 8
        %s139 = scalar_lea.vmem [#allocation3], %s138
        // Predicated region
        $region29: #{tpu_custom_call.1} parent=27 // pred_check
          %p140 = pneg %p62
        $region30: #{tpu_custom_call.1} parent=27 // pred_check_branch
          %142 = sbr.rel (%p140) target = $region32
        $region31: #{tpu_custom_call.1} parent=27 // pred_region
          %143 = dma.done %s136, 128
        $region32: #{tpu_custom_call.1} parent=27 // pred_fallthru
          _
        %p144 = pneg %p36
        %p145 = pneg %p33
        %s146 = sand.u32 %s49, 1
        %s147 = scalar_lea.sflag [#allocation4], %s146
        %s148 = sand.u32 %s49, 1
        %s149 = smul.addr %s148, 8
        %s150 = scalar_lea.vmem [#allocation3], %s149
        %p151 = pneg %p62
        %p152 = pneg %p59
        %p153 = pneg %p88
        %p154 = pneg %p85
        %s155 = sand.u32 %s75, 1
        %s156 = scalar_lea.sflag [#allocation5], %s155
        %s157 = sand.u32 %s75, 1
        %s158 = smul.addr %s157, 8
        %s159 = scalar_lea.vmem [#allocation6], %s158
        %v160 = vld [vmem:[%s139] sm:$0xff]
        %v161 = vmul.f32 %v160, %v160
        %vm162 = vcmask 261120
        %v163 = vsel %vm162, %v161, 0.0
        %164 = vadd.xlane.f32.xlu0 %v163
        %v165 = vpop.xlane.xlu0 %164
        %v166 = vrsqrt.pop %v165
        %v167 = vmul.f32 %v165, %v166
        %vm168 = vcmp.eq.f32.partialorder %v165, inf
        %v169 = vsel %vm168, %v165, %v167
        %vm170 = vcmp.eq.f32.partialorder %v165, 0.0
        %v171 = vand.u32 %v165, 2147483648
        %v172 = vsel %vm170, %v171, %v169
        %v173 = vmul.f32 %v172, 0.17677669
        %s174 = sld [smem:[#allocation2]]
        %v175 = vmax.f32 %v173, 1e-05
        %v176 = vstv %s174
        %v177 = vrcp.pop %v175
        %v178 = vmul.f32 %v176, %v177
        %v179 = vmul.f32 %v160, %v178
        %180 = vst.msk [vmem:[%s159] sm:$0xff] %vm162, %v179
        %s181 = sand.u32 %s75, 1
        %s182 = scalar_lea.sflag [#allocation5], %s181
        %s183 = sand.u32 %s75, 1
        %s184 = smul.addr %s183, 8
        %s185 = scalar_lea.vmem [#allocation6], %s184
        // Predicated region
        $region33: #{tpu_custom_call.1} parent=27 // pred_check
          %p186 = pneg %p85
        $region34: #{tpu_custom_call.1} parent=27 // pred_check_branch
          %188 = sbr.rel (%p186) target = $region36
        $region35: #{tpu_custom_call.1} parent=27 // pred_region
          %s190 = ssub.s32 128, 128
          %191 = vsyncadd %s182, %s190
          %s192 = smul.addr %s20, 128
          %s193 = scalar_lea.hbm %s2, %s192
          %s195 = sshll.u32 %s185, 4
          %s196 = int_to_ptr.vmem [resolvable:$true] %s195
          %198 = dma.vmem_to_hbm [thread:$0]  %s196, 128, %s193, %s182
        $region36: #{tpu_custom_call.1} parent=27 // pred_fallthru
          _
      $region28: #{tpu_custom_call.1} parent=5 // pred_fallthru
        _
      %p199 = scmp.le.s32.totalorder 2, %s15
      // Predicated region
      $region37: #{tpu_custom_call.1} parent=5 // pred_check
        %p200 = pneg %p199
      $region38: #{tpu_custom_call.1} parent=5 // pred_check_branch
        %202 = sbr.rel (%p200) target = $region40
      $region39: #{tpu_custom_call.1} parent=5 // pred_region
        %s203 = ssub.s32 %s15, 2
        // Predicated region
        $region41: #{tpu_custom_call.1} parent=39 // pred_check
          %p204 = pneg %p91
        $region42: #{tpu_custom_call.1} parent=39 // pred_check_branch
          %206 = sbr.rel (%p204) target = $region44
        $region43: #{tpu_custom_call.1} parent=39 // pred_region
          %s207 = sand.u32 %s76, 1
          %s208 = scalar_lea.sflag [#allocation5], %s207
          %s209 = sand.u32 %s76, 1
          %s210 = smul.addr %s209, 8
          %s211 = scalar_lea.vmem [#allocation6], %s210
          %212 = dma.done %s208, 128
        $region44: #{tpu_custom_call.1} parent=39 // pred_fallthru
          _
      $region40: #{tpu_custom_call.1} parent=5 // pred_fallthru
        _
    $region6: #{tpu_custom_call.1} parent=1 // loop_footer
      %s19 = sadd.s32 1, %s15
    $region7: #{tpu_custom_call.1} parent=1 // loop_footer_branch
      %14 = sbr.rel target = $region3
    $region8: #{tpu_custom_call.1} parent=1 // loop_exit
      _
    %213 = vsyncpa [#allocation4], 1
    %s214 = scalar_lea.sflag [#allocation4], 1
    %215 = vsyncpa %s214, 1
    %216 = vsyncpa [#allocation5], 1
    %s217 = scalar_lea.sflag [#allocation5], 1
    %218 = vsyncpa %s217, 1

</llo_original>
